<compile_context>
chip_gen: v7x
topology: tpu7x:2x2x1
jax: 0.10.0
libtpu: 0.0.40
codegen_flags: <defaults>
</compile_context>

<pallas_src>
import functools

import jax
import jax.numpy as jnp
from jax.experimental import pallas as pl
from jax.experimental.pallas import tpu as pltpu


def _round_up(x, m):
    return (x + m - 1) // m * m


def _vmem_limit_bytes():
    """3/4 of physical VMEM, with a conservative fallback."""
    try:
        cap = int(pltpu.get_tpu_info().vmem_capacity_bytes)
        return max(32 * 1024 * 1024, (cap * 3) // 4)
    except Exception:
        return 64 * 1024 * 1024


# ----------------------------------------------------------------------------
# Hoisted im2col: build the (K*C_in, L_out_pad) column matrix once per batch
# element from the phase-split resident input row (all contiguous lane reads).
# ----------------------------------------------------------------------------
def _build_im2col(x_ref, col_ref, *, kernel_size, stride, c_in, l_out_pad):
    # x_ref : (stride*C_in, L_phase), phase r occupies rows [r*C_in, (r+1)*C_in)
    #         with X_r[:, m] = x_pad[:, m*stride + r]
    # tap kk = a*stride + r needs x_pad[:, p*stride + kk] = X_r[:, p + a]
    for kk in range(kernel_size):
        a, r = kk // stride, kk % stride
        col_ref[pl.ds(kk * c_in, c_in), :] = x_ref[pl.ds(r * c_in, c_in),
                                                   pl.ds(a, l_out_pad)]


# ----------------------------------------------------------------------------
# Pass 1: conv (one matmul per L tile from the hoisted im2col) + BN statistics.
# ----------------------------------------------------------------------------
def _conv_stats_kernel(x_ref, w_ref, sum_ref, sq_ref, col_ref, *,
                       kernel_size, stride, c_in, tile_l, l_out, l_out_pad):
    """
    x_ref   : (stride*C_in, L_phase)  phase-split padded input row (resident)
    w_ref   : (C_out, K*C_in)         conv weight, row index = k*C_in + i
    sum_ref : (C_out, 1)              per-channel running sum   (resident over j)
    sq_ref  : (C_out, 1)              per-channel running sumsq (resident over j)
    col_ref : (K*C_in, L_out_pad)     VMEM scratch, hoisted im2col
    """
    j = pl.program_id(1)

    @pl.when(j == 0)
    def _():
        _build_im2col(x_ref, col_ref, kernel_size=kernel_size, stride=stride,
                      c_in=c_in, l_out_pad=l_out_pad)
        sum_ref[...] = jnp.zeros_like(sum_ref)
        sq_ref[...] = jnp.zeros_like(sq_ref)

    base = pl.multiple_of(j * tile_l, 128)
    xcol = col_ref[:, pl.ds(base, tile_l)]
    z = jnp.dot(w_ref[...], xcol, preferred_element_type=jnp.float32)

    ragged = (l_out % tile_l) != 0
    if not ragged:
        sum_ref[...] += jnp.sum(z, axis=1, keepdims=True)
        sq_ref[...] += jnp.sum(z * z, axis=1, keepdims=True)
    else:
        last = pl.num_programs(1) - 1

        @pl.when(j != last)
        def _():
            sum_ref[...] += jnp.sum(z, axis=1, keepdims=True)
            sq_ref[...] += jnp.sum(z * z, axis=1, keepdims=True)

        @pl.when(j == last)
        def _():
            # Mask the right-padding columns (only on the last tile).
            col = jax.lax.broadcasted_iota(jnp.int32, z.shape, 1)
            valid = col < (l_out - j * tile_l)
            zm = jnp.where(valid, z, 0.0)
            sum_ref[...] += jnp.sum(zm, axis=1, keepdims=True)
            sq_ref[...] += jnp.sum(zm * z, axis=1, keepdims=True)


# ----------------------------------------------------------------------------
# Pass 2: recompute conv tile, apply folded BatchNorm affine + ReLU.
# ----------------------------------------------------------------------------
def _conv_bn_relu_kernel(x_ref, w_ref, scale_ref, shift_ref, o_ref, col_ref, *,
                         kernel_size, stride, c_in, tile_l, l_out_pad):
    j = pl.program_id(1)

    @pl.when(j == 0)
    def _():
        _build_im2col(x_ref, col_ref, kernel_size=kernel_size, stride=stride,
                      c_in=c_in, l_out_pad=l_out_pad)

    base = pl.multiple_of(j * tile_l, 128)
    xcol = col_ref[:, pl.ds(base, tile_l)]
    z = jnp.dot(w_ref[...], xcol, preferred_element_type=jnp.float32)
    o_ref[...] = jnp.maximum(z * scale_ref[...] + shift_ref[...], 0.0)


def conv1d_bn_relu(x, weight, bias, gamma, beta, *,
                   stride=1, padding=0, eps=1e-5, max_tile_l=8192):
    """torch Conv1d(C_in,C_out,K,stride,padding) -> BatchNorm1d(train) -> ReLU.

    x      : (N, C_in, L)       float32, PyTorch NCL layout (kept end-to-end)
    weight : (C_out, C_in, K)
    bias   : (C_out,)           accepted but unused: training-mode BN cancels it
    gamma  : (C_out,)
    beta   : (C_out,)
    returns: (N, C_out, L_out)
    """
    del bias  # exactly cancelled by the BN mean subtraction (mathematically identical)
    n, c_in, l = x.shape
    c_out, c_in_w, k = weight.shape
    assert c_in_w == c_in
    assert max_tile_l % 128 == 0, "max_tile_l must be a multiple of 128"
    l_out = (l + 2 * padding - k) // stride + 1
    assert l_out > 0

    # ---- L_out tiling: minimum tile count for max_tile_l, then balance and
    #      round each tile up to a multiple of 128 (lane-dense stores).
    gl = pl.cdiv(l_out, max_tile_l)
    tile_l = _round_up(pl.cdiv(l_out, gl), 128)
    l_out_pad = gl * tile_l

    # ---- input framing + phase split so every in-kernel read is contiguous.
    # Padded-frame index q = p*stride + kk for output p, tap kk.
    ext = (k - 1) // stride                     # max tap offset in phase frame
    l_ph = l_out_pad + ext                      # per-phase length
    frame = l_ph * stride                       # padded-frame length
    xf = jnp.pad(x.astype(jnp.float32),
                 ((0, 0), (0, 0), (padding, max(0, frame - padding - l))))
    xf = xf[:, :, :frame]
    # (N, C_in, L_ph, S) -> (N, S, C_in, L_ph) -> (N, S*C_in, L_ph)
    xps = xf.reshape(n, c_in, l_ph, stride).transpose(0, 3, 1, 2)
    xps = xps.reshape(n, stride * c_in, l_ph)

    # conv weight as a single (C_out, K*C_in) matrix, row index = k*C_in + i
    w2 = jnp.transpose(weight.astype(jnp.float32), (0, 2, 1)).reshape(c_out, k * c_in)

    vmem_limit = _vmem_limit_bytes()
    cparams = pltpu.CompilerParams(
        dimension_semantics=("parallel", "arbitrary"),
        vmem_limit_bytes=vmem_limit)

    # ---- Pass 1: statistics only (no z written to HBM).
    kern1 = functools.partial(_conv_stats_kernel, kernel_size=k, stride=stride,
                              c_in=c_in, tile_l=tile_l, l_out=l_out,
                              l_out_pad=l_out_pad)
    zsum, zsq = pl.pallas_call(
        kern1,
        grid=(n, gl),
        in_specs=[
            # full phase-split row per batch element; constant along j
            pl.BlockSpec((None, stride * c_in, l_ph), lambda b, j: (b, 0, 0)),
            pl.BlockSpec((c_out, k * c_in), lambda b, j: (0, 0)),
        ],
        out_specs=(
            pl.BlockSpec((None, c_out, 1), lambda b, j: (b, 0, 0)),
            pl.BlockSpec((None, c_out, 1), lambda b, j: (b, 0, 0)),
        ),
        out_shape=(
            jax.ShapeDtypeStruct((n, c_out, 1), jnp.float32),
            jax.ShapeDtypeStruct((n, c_out, 1), jnp.float32),
        ),
        scratch_shapes=[pltpu.VMEM((k * c_in, l_out_pad), jnp.float32)],
        compiler_params=cparams,
    )(xps, w2)

    # ---- BN statistics + folded affine (tiny per-channel vectors, plain JAX).
    # One-pass E[z^2]-E[z]^2 variance; fine at f32 for conv activations.
    cnt = float(n * l_out)
    total_sum = jnp.sum(zsum, axis=(0, 2))                      # (C_out,)
    total_sq = jnp.sum(zsq, axis=(0, 2))                        # (C_out,)
    mean = total_sum / cnt
    var = jnp.maximum(total_sq / cnt - mean * mean, 0.0)        # biased variance
    scale = (gamma.astype(jnp.float32) * jax.lax.rsqrt(var + eps)).reshape(c_out, 1)
    shift = beta.astype(jnp.float32).reshape(c_out, 1) - mean.reshape(c_out, 1) * scale

    # ---- Pass 2: recompute conv tile, fused affine + ReLU, lane-dense out.
    kern2 = functools.partial(_conv_bn_relu_kernel, kernel_size=k, stride=stride,
                              c_in=c_in, tile_l=tile_l, l_out_pad=l_out_pad)
    out_pad = pl.pallas_call(
        kern2,
        grid=(n, gl),
        in_specs=[
            pl.BlockSpec((None, stride * c_in, l_ph), lambda b, j: (b, 0, 0)),
            pl.BlockSpec((c_out, k * c_in), lambda b, j: (0, 0)),
            pl.BlockSpec((c_out, 1), lambda b, j: (0, 0)),
            pl.BlockSpec((c_out, 1), lambda b, j: (0, 0)),
        ],
        out_specs=pl.BlockSpec((None, c_out, tile_l), lambda b, j: (b, 0, j)),
        out_shape=jax.ShapeDtypeStruct((n, c_out, l_out_pad), jnp.float32),
        scratch_shapes=[pltpu.VMEM((k * c_in, l_out_pad), jnp.float32)],
        compiler_params=cparams,
    )(xps, w2, scale, shift)

    if l_out_pad != l_out:
        out_pad = out_pad[:, :, :l_out]
    return out_pad


def _reference(x_ncl, weight, bias, gamma, beta, *, stride, padding, eps=1e-5):
    """Pure-JAX reference reproducing torch Conv1d + BatchNorm1d(train) + ReLU."""
    y = jax.lax.conv_general_dilated(
        x_ncl, weight,
        window_strides=(stride,),
        padding=[(padding, padding)],
        dimension_numbers=('NCH', 'OIH', 'NCH'),
        precision=jax.lax.Precision.HIGHEST)
    y = y + bias[None, :, None]
    mean = jnp.mean(y, axis=(0, 2), keepdims=True)
    var = jnp.mean((y - mean) ** 2, axis=(0, 2), keepdims=True)  # biased
    y = (y - mean) * jax.lax.rsqrt(var + eps)
    y = y * gamma[None, :, None] + beta[None, :, None]
    return jnp.maximum(y, 0.0)


if __name__ == "__main__":
    # Conv1d(n_input=4, n_output=8, kernel_size=3, stride=1, padding=1)
    N, C_IN, L = 2, 4, 16
    C_OUT, K, PAD = 8, 3, 1

    key = jax.random.PRNGKey(0)
    kx, kw, kb, kg, kbe, kx2 = jax.random.split(key, 6)
    x = jax.random.normal(kx, (N, C_IN, L), dtype=jnp.float32)
    weight = jax.random.normal(kw, (C_OUT, C_IN, K), dtype=jnp.float32) * 0.1
    bias = jax.random.normal(kb, (C_OUT,), dtype=jnp.float32) * 0.1
    gamma = 1.0 + 0.1 * jax.random.normal(kg, (C_OUT,), dtype=jnp.float32)
    beta = 0.1 * jax.random.normal(kbe, (C_OUT,), dtype=jnp.float32)

    # 1) Single-tile path (L_out rounded up to one lane-dense 128 tile).
    out = conv1d_bn_relu(x, weight, bias, gamma, beta, stride=1, padding=PAD)
    out = jax.block_until_ready(out)
    ref = _reference(x, weight, bias, gamma, beta, stride=1, padding=PAD)
    assert out.shape == ref.shape == (N, C_OUT, L), (out.shape, ref.shape)
    assert jnp.allclose(out, ref, atol=2e-4, rtol=2e-4), \
        float(jnp.max(jnp.abs(out - ref)))

    # 2) Multi-tile path: grid along L, masked ragged last tile, cross-tile
    #    stats accumulation (small max_tile_l to force several tiles).
    L2 = 300
    x2 = jax.random.normal(kx2, (N, C_IN, L2), dtype=jnp.float32)
    out2 = conv1d_bn_relu(x2, weight, bias, gamma, beta,
                          stride=1, padding=PAD, max_tile_l=128)
    out2 = jax.block_until_ready(out2)
    ref2 = _reference(x2, weight, bias, gamma, beta, stride=1, padding=PAD)
    assert out2.shape == ref2.shape == (N, C_OUT, L2), (out2.shape, ref2.shape)
    assert jnp.allclose(out2, ref2, atol=2e-4, rtol=2e-4), \
        float(jnp.max(jnp.abs(out2 - ref2)))

    # 3) stride=2 path (phase-split input, contiguous in-kernel reads).
    STRIDE3 = 2
    out3 = conv1d_bn_relu(x2, weight, bias, gamma, beta,
                          stride=STRIDE3, padding=PAD, max_tile_l=128)
    out3 = jax.block_until_ready(out3)
    ref3 = _reference(x2, weight, bias, gamma, beta, stride=STRIDE3, padding=PAD)
    L_OUT3 = (L2 + 2 * PAD - K) // STRIDE3 + 1
    assert out3.shape == ref3.shape == (N, C_OUT, L_OUT3), (out3.shape, ref3.shape)
    assert jnp.allclose(out3, ref3, atol=2e-4, rtol=2e-4), \
        float(jnp.max(jnp.abs(out3 - ref3)))

    print("KERNEL_OK")
</pallas_src>

<mosaic_0001>
module attributes {stable_mosaic.version = 11 : i64} {
  func.func @_conv_stats_kernel(%arg0: i32, %arg1: i32, %arg2: memref<1x4x130xf32, #tpu.memory_space<vmem>>, %arg3: memref<8x12xf32, #tpu.memory_space<vmem>>, %arg4: memref<1x8x1xf32, #tpu.memory_space<vmem>>, %arg5: memref<1x8x1xf32, #tpu.memory_space<vmem>>, %arg6: memref<12x128xf32, #tpu.memory_space<vmem>>) attributes {dimension_semantics = [#tpu.dimension_semantics<parallel>, #tpu.dimension_semantics<arbitrary>], iteration_bounds = array<i64: 2, 1>, scalar_prefetch = 0 : i64, scratch_operands = 1 : i64, tpu.core_type = #tpu.core_type<tc>, window_params = [{transform_indices = @transform_0, window_bounds = array<i64: 1, 4, 130>}, {pipeline_mode = #tpu.pipeline_mode<synchronous>, transform_indices = @transform_1, window_bounds = array<i64: 8, 12>}, {transform_indices = @transform_2, window_bounds = array<i64: 1, 8, 1>}, {transform_indices = @transform_3, window_bounds = array<i64: 1, 8, 1>}]} {
    %c0_i32 = arith.constant 0 : i32
    %0 = arith.cmpi eq, %arg1, %c0_i32 : i32
    %1 = arith.extui %0 : i1 to i32
    %c0_i32_0 = arith.constant 0 : i32
    %2 = arith.cmpi ne, %1, %c0_i32_0 : i32
    scf.if %2 {
      %c0_7 = arith.constant 0 : index
      %c0_8 = arith.constant 0 : index
      %c0_9 = arith.constant 0 : index
      %15 = vector.load %arg2[%c0_7, %c0_8, %c0_9] : memref<1x4x130xf32, #tpu.memory_space<vmem>>, vector<1x4x128xf32>
      %16 = vector.shape_cast %15 : vector<1x4x128xf32> to vector<4x128xf32>
      %c0_10 = arith.constant 0 : index
      %c0_11 = arith.constant 0 : index
      %17 = vector.load %arg6[%c0_10, %c0_11] : memref<12x128xf32, #tpu.memory_space<vmem>>, vector<4x128xf32>
      tpu.vector_store %arg6[%c0_10, %c0_11], %16 {strides = array<i32>} : memref<12x128xf32, #tpu.memory_space<vmem>>, vector<4x128xf32>,
      %c0_12 = arith.constant 0 : index
      %c0_13 = arith.constant 0 : index
      %c1 = arith.constant 1 : index
      %18 = vector.load %arg2[%c0_12, %c0_13, %c1] : memref<1x4x130xf32, #tpu.memory_space<vmem>>, vector<1x4x128xf32>
      %19 = vector.shape_cast %18 : vector<1x4x128xf32> to vector<4x128xf32>
      %c4 = arith.constant 4 : index
      %c0_14 = arith.constant 0 : index
      %20 = vector.load %arg6[%c4, %c0_14] : memref<12x128xf32, #tpu.memory_space<vmem>>, vector<4x128xf32>
      tpu.vector_store %arg6[%c4, %c0_14], %19 {strides = array<i32>} : memref<12x128xf32, #tpu.memory_space<vmem>>, vector<4x128xf32>,
      %c0_15 = arith.constant 0 : index
      %c0_16 = arith.constant 0 : index
      %c2 = arith.constant 2 : index
      %21 = vector.load %arg2[%c0_15, %c0_16, %c2] : memref<1x4x130xf32, #tpu.memory_space<vmem>>, vector<1x4x128xf32>
      %22 = vector.shape_cast %21 : vector<1x4x128xf32> to vector<4x128xf32>
      %c8 = arith.constant 8 : index
      %c0_17 = arith.constant 0 : index
      %23 = vector.load %arg6[%c8, %c0_17] : memref<12x128xf32, #tpu.memory_space<vmem>>, vector<4x128xf32>
      tpu.vector_store %arg6[%c8, %c0_17], %22 {strides = array<i32>} : memref<12x128xf32, #tpu.memory_space<vmem>>, vector<4x128xf32>,
      %cst_18 = arith.constant 0.000000e+00 : f32
      %24 = vector.broadcast %cst_18 : f32 to vector<8x1xf32>
      %c0_19 = arith.constant 0 : index
      %c0_20 = arith.constant 0 : index
      %c0_21 = arith.constant 0 : index
      %25 = vector.load %arg4[%c0_19, %c0_20, %c0_21] : memref<1x8x1xf32, #tpu.memory_space<vmem>>, vector<1x8x1xf32>
      %26 = vector.shape_cast %25 : vector<1x8x1xf32> to vector<8x1xf32>
      %27 = vector.shape_cast %24 : vector<8x1xf32> to vector<1x8x1xf32>
      tpu.vector_store %arg4[%c0_19, %c0_20, %c0_21], %27 {strides = array<i32>} : memref<1x8x1xf32, #tpu.memory_space<vmem>>, vector<1x8x1xf32>,
      %cst_22 = arith.constant 0.000000e+00 : f32
      %28 = vector.broadcast %cst_22 : f32 to vector<8x1xf32>
      %c0_23 = arith.constant 0 : index
      %c0_24 = arith.constant 0 : index
      %c0_25 = arith.constant 0 : index
      %29 = vector.load %arg5[%c0_23, %c0_24, %c0_25] : memref<1x8x1xf32, #tpu.memory_space<vmem>>, vector<1x8x1xf32>
      %30 = vector.shape_cast %29 : vector<1x8x1xf32> to vector<8x1xf32>
      %31 = vector.shape_cast %28 : vector<8x1xf32> to vector<1x8x1xf32>
      tpu.vector_store %arg5[%c0_23, %c0_24, %c0_25], %31 {strides = array<i32>} : memref<1x8x1xf32, #tpu.memory_space<vmem>>, vector<1x8x1xf32>,
    } else {
    }
    %c128_i32 = arith.constant 128 : i32
    %3 = arith.muli %arg1, %c128_i32 : i32
    %4 = tpu.assume_multiple %3, 128 : i32
    %c0 = arith.constant 0 : index
    %5 = arith.index_cast %4 : i32 to index
    %6 = vector.load %arg6[%c0, %5] : memref<12x128xf32, #tpu.memory_space<vmem>>, vector<12x128xf32>
    %c0_1 = arith.constant 0 : index
    %c0_2 = arith.constant 0 : index
    %7 = vector.load %arg3[%c0_1, %c0_2] : memref<8x12xf32, #tpu.memory_space<vmem>>, vector<8x12xf32>
    %cst = arith.constant dense<0.000000e+00> : vector<8x128xf32>
    %8 = tpu.matmul %7, %6, %cst {dimension_numbers = #tpu.dot_dimension_numbers<[1], [0], [0], [1], [0, 0, 1, 1], [], []>} : vector<8x12xf32>, vector<12x128xf32>, vector<8x128xf32> -> vector<8x128xf32>
    %c0_i32_3 = arith.constant 0 : i32
    %9 = arith.cmpi ne, %arg1, %c0_i32_3 : i32
    %10 = arith.extui %9 : i1 to i32
    %c0_i32_4 = arith.constant 0 : i32
    %11 = arith.cmpi ne, %10, %c0_i32_4 : i32
    scf.if %11 {
      %c0_7 = arith.constant 0 : index
      %c0_8 = arith.constant 0 : index
      %c0_9 = arith.constant 0 : index
      %15 = vector.load %arg4[%c0_7, %c0_8, %c0_9] : memref<1x8x1xf32, #tpu.memory_space<vmem>>, vector<1x8x1xf32>
      %16 = vector.shape_cast %15 : vector<1x8x1xf32> to vector<8x1xf32>
      %cst_10 = arith.constant dense<0.000000e+00> : vector<8xf32>
      %17 = vector.multi_reduction <add>, %8, %cst_10 [1] : vector<8x128xf32> to vector<8xf32>
      %18 = vector.shape_cast %17 : vector<8xf32> to vector<8x1xf32>
      %19 = arith.addf %16, %18 : vector<8x1xf32>
      %c0_11 = arith.constant 0 : index
      %c0_12 = arith.constant 0 : index
      %c0_13 = arith.constant 0 : index
      %20 = vector.load %arg4[%c0_11, %c0_12, %c0_13] : memref<1x8x1xf32, #tpu.memory_space<vmem>>, vector<1x8x1xf32>
      %21 = vector.shape_cast %20 : vector<1x8x1xf32> to vector<8x1xf32>
      %22 = vector.shape_cast %19 : vector<8x1xf32> to vector<1x8x1xf32>
      tpu.vector_store %arg4[%c0_11, %c0_12, %c0_13], %22 {strides = array<i32>} : memref<1x8x1xf32, #tpu.memory_space<vmem>>, vector<1x8x1xf32>,
      %c0_14 = arith.constant 0 : index
      %c0_15 = arith.constant 0 : index
      %c0_16 = arith.constant 0 : index
      %23 = vector.load %arg5[%c0_14, %c0_15, %c0_16] : memref<1x8x1xf32, #tpu.memory_space<vmem>>, vector<1x8x1xf32>
      %24 = vector.shape_cast %23 : vector<1x8x1xf32> to vector<8x1xf32>
      %25 = arith.mulf %8, %8 : vector<8x128xf32>
      %cst_17 = arith.constant dense<0.000000e+00> : vector<8xf32>
      %26 = vector.multi_reduction <add>, %25, %cst_17 [1] : vector<8x128xf32> to vector<8xf32>
      %27 = vector.shape_cast %26 : vector<8xf32> to vector<8x1xf32>
      %28 = arith.addf %24, %27 : vector<8x1xf32>
      %c0_18 = arith.constant 0 : index
      %c0_19 = arith.constant 0 : index
      %c0_20 = arith.constant 0 : index
      %29 = vector.load %arg5[%c0_18, %c0_19, %c0_20] : memref<1x8x1xf32, #tpu.memory_space<vmem>>, vector<1x8x1xf32>
      %30 = vector.shape_cast %29 : vector<1x8x1xf32> to vector<8x1xf32>
      %31 = vector.shape_cast %28 : vector<8x1xf32> to vector<1x8x1xf32>
      tpu.vector_store %arg5[%c0_18, %c0_19, %c0_20], %31 {strides = array<i32>} : memref<1x8x1xf32, #tpu.memory_space<vmem>>, vector<1x8x1xf32>,
    } else {
    }
    %c0_i32_5 = arith.constant 0 : i32
    %12 = arith.cmpi eq, %arg1, %c0_i32_5 : i32
    %13 = arith.extui %12 : i1 to i32
    %c0_i32_6 = arith.constant 0 : i32
    %14 = arith.cmpi ne, %13, %c0_i32_6 : i32
    scf.if %14 {
      %15 = tpu.iota {dimensions = array<i32: 1>} : vector<8x128xi32>
      %c128_i32_7 = arith.constant 128 : i32
      %16 = arith.muli %arg1, %c128_i32_7 : i32
      %c16_i32 = arith.constant 16 : i32
      %17 = arith.subi %c16_i32, %16 : i32
      %18 = vector.broadcast %17 : i32 to vector<8x128xi32>
      %19 = arith.cmpi slt, %15, %18 : vector<8x128xi32>
      %cst_8 = arith.constant 0.000000e+00 : f32
      %20 = vector.broadcast %cst_8 : f32 to vector<8x128xf32>
      %21 = arith.select %19, %8, %20 : vector<8x128xi1>, vector<8x128xf32>
      %c0_9 = arith.constant 0 : index
      %c0_10 = arith.constant 0 : index
      %c0_11 = arith.constant 0 : index
      %22 = vector.load %arg4[%c0_9, %c0_10, %c0_11] : memref<1x8x1xf32, #tpu.memory_space<vmem>>, vector<1x8x1xf32>
      %23 = vector.shape_cast %22 : vector<1x8x1xf32> to vector<8x1xf32>
      %cst_12 = arith.constant dense<0.000000e+00> : vector<8xf32>
      %24 = vector.multi_reduction <add>, %21, %cst_12 [1] : vector<8x128xf32> to vector<8xf32>
      %25 = vector.shape_cast %24 : vector<8xf32> to vector<8x1xf32>
      %26 = arith.addf %23, %25 : vector<8x1xf32>
      %c0_13 = arith.constant 0 : index
      %c0_14 = arith.constant 0 : index
      %c0_15 = arith.constant 0 : index
      %27 = vector.load %arg4[%c0_13, %c0_14, %c0_15] : memref<1x8x1xf32, #tpu.memory_space<vmem>>, vector<1x8x1xf32>
      %28 = vector.shape_cast %27 : vector<1x8x1xf32> to vector<8x1xf32>
      %29 = vector.shape_cast %26 : vector<8x1xf32> to vector<1x8x1xf32>
      tpu.vector_store %arg4[%c0_13, %c0_14, %c0_15], %29 {strides = array<i32>} : memref<1x8x1xf32, #tpu.memory_space<vmem>>, vector<1x8x1xf32>,
      %c0_16 = arith.constant 0 : index
      %c0_17 = arith.constant 0 : index
      %c0_18 = arith.constant 0 : index
      %30 = vector.load %arg5[%c0_16, %c0_17, %c0_18] : memref<1x8x1xf32, #tpu.memory_space<vmem>>, vector<1x8x1xf32>
      %31 = vector.shape_cast %30 : vector<1x8x1xf32> to vector<8x1xf32>
      %32 = arith.mulf %21, %8 : vector<8x128xf32>
      %cst_19 = arith.constant dense<0.000000e+00> : vector<8xf32>
      %33 = vector.multi_reduction <add>, %32, %cst_19 [1] : vector<8x128xf32> to vector<8xf32>
      %34 = vector.shape_cast %33 : vector<8xf32> to vector<8x1xf32>
      %35 = arith.addf %31, %34 : vector<8x1xf32>
      %c0_20 = arith.constant 0 : index
      %c0_21 = arith.constant 0 : index
      %c0_22 = arith.constant 0 : index
      %36 = vector.load %arg5[%c0_20, %c0_21, %c0_22] : memref<1x8x1xf32, #tpu.memory_space<vmem>>, vector<1x8x1xf32>
      %37 = vector.shape_cast %36 : vector<1x8x1xf32> to vector<8x1xf32>
      %38 = vector.shape_cast %35 : vector<8x1xf32> to vector<1x8x1xf32>
      tpu.vector_store %arg5[%c0_20, %c0_21, %c0_22], %38 {strides = array<i32>} : memref<1x8x1xf32, #tpu.memory_space<vmem>>, vector<1x8x1xf32>,
    } else {
    }
    return
  }
  func.func @transform_0(%arg0: i32, %arg1: i32) -> (i32, i32, i32) {
    %c0_i32 = arith.constant 0 : i32
    %c0_i32_0 = arith.constant 0 : i32
    %c0_i32_1 = arith.constant 0 : i32
    return %arg0, %c0_i32, %c0_i32_0 : i32, i32, i32
  }
  func.func @transform_1(%arg0: i32, %arg1: i32) -> (i32, i32) {
    %c0_i32 = arith.constant 0 : i32
    %c0_i32_0 = arith.constant 0 : i32
    %c0_i32_1 = arith.constant 0 : i32
    return %c0_i32, %c0_i32_0 : i32, i32
  }
  func.func @transform_2(%arg0: i32, %arg1: i32) -> (i32, i32, i32) {
    %c0_i32 = arith.constant 0 : i32
    %c0_i32_0 = arith.constant 0 : i32
    %c0_i32_1 = arith.constant 0 : i32
    return %arg0, %c0_i32, %c0_i32_0 : i32, i32, i32
  }
  func.func @transform_3(%arg0: i32, %arg1: i32) -> (i32, i32, i32) {
    %c0_i32 = arith.constant 0 : i32
    %c0_i32_0 = arith.constant 0 : i32
    %c0_i32_1 = arith.constant 0 : i32
    return %arg0, %c0_i32, %c0_i32_0 : i32, i32, i32
  }
}

</mosaic_0001>

<llo_original>
// kernel: tpu_custom_call.1
$region0: #{tpu_custom_call.1}
  #allocation0 [shape = 'u32[]', space=smem, size = 0x4, offset = 0x4, fixed_abs, tag = 'smem constant byte address 0x4 - core index']
  #allocation1 [shape = 'u32[144,128]{1,0:T(1,128)}', space=vmem, size = 0x12000, scoped, tag = 'internal scratch']
  #allocation2 [shape = 'f32[12,128]{1,0:T(8,128)}', space=vmem, size = 0x2000, scoped, tag = 'scratch operand']
  %s0 = inlined_call_operand.hbm [shape: f32[2,4,130], index: 0, kind: input, shape index: {}]
  %s1 = inlined_call_operand.hbm [shape: f32[8,12], index: 1, kind: input, shape index: {}]
  %s2 = inlined_call_operand.hbm [shape: f32[2,8,1], index: 2, kind: output, shape index: {0}]
  %s3 = inlined_call_operand.hbm [shape: f32[2,8,1], index: 3, kind: output, shape index: {1}]
  %4 = xla_tuple %s2, %s3
  %s5 = sld [smem:[#allocation0]]
  $region69: #{tpu_custom_call.1} parent=0
    _
  %s7 = ssub.s32 1, %s5
  %s8 = scalar_select 0, %s7, %s5
  $region1: #{tpu_custom_call.1} parent=0
    #allocation3 [shape = 'u8[8192]{0}', space=vmem, size = 0x2000, scoped, tag = 'input window, operand 0']
    #allocation4 [shape = 's32[2]{0}', space=sflag, size = 0x8, scoped, tag = 'scoped memory for tpu_custom_call.1']
    #allocation5 [shape = 's32[2]{0}', space=sflag, size = 0x8, scoped, tag = 'scoped memory for tpu_custom_call.1']
    #allocation6 [shape = 'u8[4096]{0}', space=vmem, size = 0x1000, scoped, tag = 'input window, operand 1, single buffered']
    #allocation7 [shape = 's32[1]{0}', space=sflag, size = 0x4, scoped, tag = 'scoped memory for tpu_custom_call.1']
    #allocation8 [shape = 'u8[8192]{0}', space=vmem, size = 0x2000, scoped, tag = 'output window, operand 0']
    #allocation9 [shape = 'u8[8192]{0}', space=vmem, size = 0x2000, scoped, tag = 'output window, operand 1']
    #allocation10 [shape = 's32[2]{0}', space=sflag, size = 0x8, scoped, tag = 'scoped memory for tpu_custom_call.1']
    %9 = vsyncpa [#allocation4], 0
    %s10 = scalar_lea.sflag [#allocation4], 1
    %11 = vsyncpa %s10, 0
    %12 = vsyncpa [#allocation7], 0
    %13 = vsyncpa [#allocation5], 0
    %s14 = scalar_lea.sflag [#allocation5], 1
    %15 = vsyncpa %s14, 0
    %16 = vsyncpa [#allocation10], 0
    %s17 = scalar_lea.sflag [#allocation10], 1
    %18 = vsyncpa %s17, 0
    loop: start=0, step=1, limit=4
    $region2: #{tpu_custom_call.1} parent=1 // loop_pre_header
      _
    $region3: #{tpu_custom_call.1} parent=1 // loop_header
      %s20 = sphi 0, %s24
      %p21 = scmp.ge.s32.totalorder %s20, 4
      %s27 = sphi 0, %s39
      %s28 = sphi 0, %s35
      %s29 = sphi 0, %s27
      %s30 = sphi 0, %s28
      %s31 = sphi 0, %s29
      %s32 = sphi 0, %s30
      %s42 = sphi 0, %s44
      %s45 = sphi 0, %s42
      %s46 = sphi 0, %s45
      %s62 = sphi 0, %s46
      %s66 = sphi 0, %s66
      %s68 = sphi 0, %s66
      %s69 = sphi 0, %s68
      %s83 = sphi 0, %s69
      %s89 = sphi 0, %s91
      %s92 = sphi 0, %s89
      %s93 = sphi 0, %s92
      %s109 = sphi 0, %s93
      %s115 = sphi 0, %s117
      %s118 = sphi 0, %s115
      %s119 = sphi 0, %s118
      %s135 = sphi 0, %s119
    $region4: #{tpu_custom_call.1} parent=1 // loop_header_branch
      %23 = sbr.rel (%p21) target = $region8
    $region5: #{tpu_custom_call.1} parent=1 // loop_body
      %s25 = ssub.s32 %s20, 1
      %s26 = ssub.s32 %s20, 2
      %s33 = sadd.s32 1, %s28
      %p34 = scmp.ge.s32.totalorder %s33, 1
      %s35 = scalar_select %p34, 0, %s33
      %s36 = sadd.s32 1, %s27
      %s37 = scalar_select %p34, %s36, %s27
      %p38 = scmp.ge.s32.totalorder %s37, 2
      %s39 = scalar_select %p38, 0, %s37
      %s40 = ssub.s32 %s27, %s39
      %p41 = scmp.eq.s32.totalorder %s40, 0
      %s43 = sadd.s32 %s42, 1
      %s44 = scalar_select %p41, %s42, %s43
      %p47 = pneg %p41
      %p48 = scmp.eq.s32.totalorder %s20, 1
      %p49 = por %p47, %p48
      %p50 = scmp.ne.s32.totalorder %s42, %s45
      %p51 = scmp.eq.s32.totalorder %s20, 0
      %p52 = por %p50, %p51
      %p53 = scmp.ne.s32.totalorder %s42, %s45
      %p54 = scmp.eq.s32.totalorder %s25, 1
      %p55 = por %p53, %p54
      %p56 = scmp.ne.s32.totalorder %s45, %s46
      %p57 = scmp.eq.s32.totalorder %s25, 0
      %p58 = por %p56, %p57
      %p59 = scmp.ne.s32.totalorder %s45, %s46
      %p60 = scmp.eq.s32.totalorder %s26, 1
      %p61 = por %p59, %p60
      %p63 = scmp.ne.s32.totalorder %s46, %s62
      %p64 = scmp.eq.s32.totalorder %s26, 0
      %p65 = por %p63, %p64
      %s67 = sadd.s32 %s66, 1
      %p70 = scmp.eq.s32.totalorder %s20, 1
      %p71 = scmp.ne.s32.totalorder %s66, %s68
      %p72 = scmp.eq.s32.totalorder %s20, 0
      %p73 = por %p71, %p72
      %p74 = scmp.ne.s32.totalorder %s66, %s68
      %p75 = scmp.eq.s32.totalorder %s25, 1
      %p76 = por %p74, %p75
      %p77 = scmp.ne.s32.totalorder %s68, %s69
      %p78 = scmp.eq.s32.totalorder %s25, 0
      %p79 = por %p77, %p78
      %p80 = scmp.ne.s32.totalorder %s68, %s69
      %p81 = scmp.eq.s32.totalorder %s26, 1
      %p82 = por %p80, %p81
      %p84 = scmp.ne.s32.totalorder %s69, %s83
      %p85 = scmp.eq.s32.totalorder %s26, 0
      %p86 = por %p84, %p85
      %s87 = ssub.s32 %s27, %s39
      %p88 = scmp.eq.s32.totalorder %s87, 0
      %s90 = sadd.s32 %s89, 1
      %s91 = scalar_select %p88, %s89, %s90
      %p94 = pneg %p88
      %p95 = scmp.eq.s32.totalorder %s20, 1
      %p96 = por %p94, %p95
      %p97 = scmp.ne.s32.totalorder %s89, %s92
      %p98 = scmp.eq.s32.totalorder %s20, 0
      %p99 = por %p97, %p98
      %p100 = scmp.ne.s32.totalorder %s89, %s92
      %p101 = scmp.eq.s32.totalorder %s25, 1
      %p102 = por %p100, %p101
      %p103 = scmp.ne.s32.totalorder %s92, %s93
      %p104 = scmp.eq.s32.totalorder %s25, 0
      %p105 = por %p103, %p104
      %p106 = scmp.ne.s32.totalorder %s92, %s93
      %p107 = scmp.eq.s32.totalorder %s26, 1
      %p108 = por %p106, %p107
      %p110 = scmp.ne.s32.totalorder %s93, %s109
      %p111 = scmp.eq.s32.totalorder %s26, 0
      %p112 = por %p110, %p111
      %s113 = ssub.s32 %s27, %s39
      %p114 = scmp.eq.s32.totalorder %s113, 0
      %s116 = sadd.s32 %s115, 1
      %s117 = scalar_select %p114, %s115, %s116
      %p120 = pneg %p114
      %p121 = scmp.eq.s32.totalorder %s20, 1
      %p122 = por %p120, %p121
      %p123 = scmp.ne.s32.totalorder %s115, %s118
      %p124 = scmp.eq.s32.totalorder %s20, 0
      %p125 = por %p123, %p124
      %p126 = scmp.ne.s32.totalorder %s115, %s118
      %p127 = scmp.eq.s32.totalorder %s25, 1
      %p128 = por %p126, %p127
      %p129 = scmp.ne.s32.totalorder %s118, %s119
      %p130 = scmp.eq.s32.totalorder %s25, 0
      %p131 = por %p129, %p130
      %p132 = scmp.ne.s32.totalorder %s118, %s119
      %p133 = scmp.eq.s32.totalorder %s26, 1
      %p134 = por %p132, %p133
      %p136 = scmp.ne.s32.totalorder %s119, %s135
      %p137 = scmp.eq.s32.totalorder %s26, 0
      %p138 = por %p136, %p137
      %p139 = scmp.le.s32.totalorder 1, %s20
      %p140 = scmp.lt.s32.totalorder %s20, 3
      %p141 = pnand %p139, %p140
      %p142 = pneg %p141
      // Predicated region
      $region9: #{tpu_custom_call.1} parent=5 // pred_check
        _
      $region10: #{tpu_custom_call.1} parent=5 // pred_check_branch
        %144 = sbr.rel (%p141) target = $region12
      $region11: #{tpu_custom_call.1} parent=5 // pred_region
        %s145 = ssub.s32 %s20, 1
        // Predicated region
        $region13: #{tpu_custom_call.1} parent=11 // pred_check
          %p146 = pneg %p79
        $region14: #{tpu_custom_call.1} parent=11 // pred_check_branch
          %148 = sbr.rel (%p146) target = $region16
        $region15: #{tpu_custom_call.1} parent=11 // pred_region
          %s150 = ssub.s32 128, 128
          %151 = vsyncadd [#allocation7], %s150
          %s153 = sshll.u32 [#allocation6], 4
          %s154 = int_to_ptr.vmem [resolvable:$true] %s153
          %156 = dma.hbm_to_vmem [thread:$0]  %s1, 128, %s154, [#allocation7]
        $region16: #{tpu_custom_call.1} parent=11 // pred_fallthru
          _
      $region12: #{tpu_custom_call.1} parent=5 // pred_fallthru
        _
      %p157 = scmp.lt.s32.totalorder %s20, 2
      // Predicated region
      $region17: #{tpu_custom_call.1} parent=5 // pred_check
        %p158 = pneg %p157
      $region18: #{tpu_custom_call.1} parent=5 // pred_check_branch
        %160 = sbr.rel (%p158) target = $region20
      $region19: #{tpu_custom_call.1} parent=5 // pred_region
        // Predicated region
        $region21: #{tpu_custom_call.1} parent=19 // pred_check
          %p161 = pneg %p52
        $region22: #{tpu_custom_call.1} parent=19 // pred_check_branch
          %163 = sbr.rel (%p161) target = $region24
        $region23: #{tpu_custom_call.1} parent=19 // pred_region
          %s164 = sand.u32 %s42, 1
          %s165 = scalar_lea.sflag [#allocation4], %s164
          %s166 = sand.u32 %s42, 1
          %s167 = smul.addr %s166, 8
          %s168 = scalar_lea.vmem [#allocation3], %s167
          %s170 = ssub.s32 128, 128
          %171 = vsyncadd %s165, %s170
          %s172 = smul.addr %s27, 2
          %s173 = smul.addr %s172, 64
          %s174 = scalar_lea.hbm %s0, %s173
          %s176 = sshll.u32 %s168, 4
          %s177 = int_to_ptr.vmem [resolvable:$true] %s176
          %179 = dma.hbm_to_vmem [thread:$0]  %s174, 128, %s177, %s165
        $region24: #{tpu_custom_call.1} parent=19 // pred_fallthru
          _
      $region20: #{tpu_custom_call.1} parent=5 // pred_fallthru
        _
      %p180 = scmp.le.s32.totalorder 1, %s20
      %p181 = scmp.lt.s32.totalorder %s20, 3
      %p182 = pnand %p180, %p181
      %p183 = pneg %p182
      // Predicated region
      $region25: #{tpu_custom_call.1} parent=5 // pred_check
        _
      $region26: #{tpu_custom_call.1} parent=5 // pred_check_branch
        %185 = sbr.rel (%p182) target = $region28
      $region27: #{tpu_custom_call.1} parent=5 // pred_region
        %s186 = ssub.s32 %s20, 1
        %s187 = sand.u32 %s45, 1
        %s188 = scalar_lea.sflag [#allocation4], %s187
        %s189 = sand.u32 %s45, 1
        %s190 = smul.addr %s189, 8
        %s191 = scalar_lea.vmem [#allocation3], %s190
        // Predicated region
        $region29: #{tpu_custom_call.1} parent=27 // pred_check
          %p192 = pneg %p58
        $region30: #{tpu_custom_call.1} parent=27 // pred_check_branch
          %194 = sbr.rel (%p192) target = $region32
        $region31: #{tpu_custom_call.1} parent=27 // pred_region
          %195 = dma.done %s188, 128
        $region32: #{tpu_custom_call.1} parent=27 // pred_fallthru
          _
        // Predicated region
        $region33: #{tpu_custom_call.1} parent=27 // pred_check
          %p196 = pneg %p79
        $region34: #{tpu_custom_call.1} parent=27 // pred_check_branch
          %198 = sbr.rel (%p196) target = $region36
        $region35: #{tpu_custom_call.1} parent=27 // pred_region
          %199 = dma.done [#allocation7], 128
        $region36: #{tpu_custom_call.1} parent=27 // pred_fallthru
          _
        %s200 = sand.u32 %s45, 1
        %s201 = scalar_lea.sflag [#allocation4], %s200
        %s202 = sand.u32 %s45, 1
        %s203 = smul.addr %s202, 8
        %s204 = scalar_lea.vmem [#allocation3], %s203
        %p205 = pneg %p58
        %p206 = pneg %p55
        %p207 = pneg %p79
        %p208 = pneg %p76
        %p209 = pneg %p105
        %p210 = pneg %p102
        %s211 = sand.u32 %s92, 1
        %s212 = scalar_lea.sflag [#allocation5], %s211
        %s213 = sand.u32 %s92, 1
        %s214 = smul.addr %s213, 8
        %s215 = scalar_lea.vmem [#allocation8], %s214
        %p216 = pneg %p131
        %p217 = pneg %p128
        %s218 = sand.u32 %s118, 1
        %s219 = scalar_lea.sflag [#allocation10], %s218
        %s220 = sand.u32 %s118, 1
        %s221 = smul.addr %s220, 8
        %s222 = scalar_lea.vmem [#allocation9], %s221
        %p223 = scmp.eq.s32.totalorder %s30, 0
        // Predicated region
        $region37: #{tpu_custom_call.1} parent=27 // pred_check
          %p224 = pneg %p223
        $region38: #{tpu_custom_call.1} parent=27 // pred_check_branch
          %226 = sbr.rel (%p224) target = $region40
        $region39: #{tpu_custom_call.1} parent=27 // pred_region
          %v227 = vld [vmem:[%s191] sm:$0xf]
          %228 = vst [vmem:[#allocation2] sm:$0xf] %v227
          %v229 = vld [vmem:[%s191] sm:$0xff]
          %v231 = vcombine.high %v229, %v229
          %232 = vrot.lane.b32.xlu0 %v229, 127
          %v233 = vpop.permute.xlu0 %232
          %234 = vrot.lane.b32.xlu0 %v231, 127
          %v235 = vpop.permute.xlu0 %234
          %vm236 = vcmask 1039360
          %v237 = vsel %vm236, %v233, %v235
          %239 = vst [vmem:[#allocation2 + $0x4] sm:$0xf] %v237
          %v240 = vld [vmem:[%s191] sm:$0xff]
          %v242 = vcombine.high %v240, %v240
          %243 = vrot.lane.b32.xlu0 %v240, 126
          %v244 = vpop.permute.xlu0 %243
          %245 = vrot.lane.b32.xlu0 %v242, 126
          %v246 = vpop.permute.xlu0 %245
          %vm247 = vcmask 1031168
          %v248 = vsel %vm247, %v244, %v246
          %250 = vst [vmem:[#allocation2 + $0x8] sm:$0xf] %v248
          %vm251 = vcmask 7168
          %252 = vst.msk [vmem:[%s215] sm:$0xff] %vm251, 0.0
          %253 = vst.msk [vmem:[%s222] sm:$0xff] %vm251, 0.0
        $region40: #{tpu_custom_call.1} parent=27 // pred_fallthru
          _
        %s254 = smul.u32 %s30, 128
        %s255 = sshra.s32 %s254, 7
        %s256 = sand.u32 %s254, 127
        %s257 = scalar_lea.vmem [#allocation2], %s255
        %v258 = vld [vmem:[%s257] sm:$0xff]
        %v259 = vld [vmem:[%s257 + $0x8] sm:$0xf]
        %v260 = vld [vmem:[#allocation6] sm:$0xff]
        %vm261 = vcmask 97280
        %v263 = vsel %vm261, %v260, 0
        %vm265 = vcmask 1043456
        %v267 = vsel %vm265, %v259, 0
        %269 = vmatprep.subr.mxu0 0.0
        %270 = vmatpush1.msra.mxu0 %v258
        %271 = vmatprep.subr.mxu0 0.0
        %272 = vmatpush1.msra.mxu0 %v267
        %273 = vmatprep.subr.mxu0 0.0
        %274 = vmatpush1.msra.mxu0 0.0
        %275 = vmatprep.subr.mxu0 0.0
        %276 = vmatpush1.msra.mxu0 0.0
        %277 = vmatprep.subr.mxu0 0.0
        %278 = vmatpush1.msra.mxu0 0.0
        %279 = vmatprep.subr.mxu0 0.0
        %280 = vmatpush1.msra.mxu0 0.0
        %281 = vmatprep.subr.mxu0 0.0
        %282 = vmatpush1.msra.mxu0 0.0
        %283 = vmatprep.subr.mxu0 0.0
        %284 = vmatpush1.msra.mxu0 0.0
        %285 = vmatprep.subr.mxu0 0.0
        %286 = vmatpush1.msra.mxu0 0.0
        %287 = vmatprep.subr.mxu0 0.0
        %288 = vmatpush1.msra.mxu0 0.0
        %289 = vmatprep.subr.mxu0 0.0
        %290 = vmatpush1.msra.mxu0 0.0
        %291 = vmatprep.subr.mxu0 0.0
        %292 = vmatpush1.msra.mxu0 0.0
        %293 = vmatprep.subr.mxu0 0.0
        %294 = vmatpush1.msra.mxu0 0.0
        %295 = vmatprep.subr.mxu0 0.0
        %296 = vmatpush1.msra.mxu0 0.0
        %297 = vmatprep.subr.mxu0 0.0
        %298 = vmatpush1.msra.mxu0 0.0
        %299 = vmatprep.subr.mxu0 0.0
        %300 = vmatpush1.msra.mxu0 0.0
        %301 = vmatprep.subr.mxu0 0.0
        %302 = vmatpush1.msra.mxu0 0.0
        %303 = vmatprep.subr.mxu0 0.0
        %304 = vmatpush1.msra.mxu0 0.0
        %305 = vmatprep.subr.mxu0 0.0
        %306 = vmatpush1.msra.mxu0 0.0
        %307 = vmatprep.subr.mxu0 0.0
        %308 = vmatpush1.msra.mxu0 0.0
        %309 = vmatprep.subr.mxu0 0.0
        %310 = vmatpush1.msra.mxu0 0.0
        %311 = vmatprep.subr.mxu0 0.0
        %312 = vmatpush1.msra.mxu0 0.0
        %313 = vmatprep.subr.mxu0 0.0
        %314 = vmatpush1.msra.mxu0 0.0
        %315 = vmatprep.subr.mxu0 0.0
        %316 = vmatpush1.msra.mxu0 0.0
        %317 = vmatprep.subr.mxu0 0.0
        %318 = vmatpush1.msra.mxu0 0.0
        %319 = vmatprep.subr.mxu0 0.0
        %320 = vmatpush1.msra.mxu0 0.0
        %321 = vmatprep.subr.mxu0 0.0
        %322 = vmatpush1.msra.mxu0 0.0
        %323 = vmatprep.subr.mxu0 0.0
        %324 = vmatpush1.msra.mxu0 0.0
        %325 = vmatprep.subr.mxu0 0.0
        %326 = vmatpush1.msra.mxu0 0.0
        %327 = vmatprep.subr.mxu0 0.0
        %328 = vmatpush1.msra.mxu0 0.0
        %329 = vmatprep.subr.mxu0 0.0
        %330 = vmatpush1.msra.mxu0 0.0
        %331 = vmatprep.subr.mxu0 0.0
        %332 = vmatpush1.msra.mxu0 0.0
        %333 = vmatprep.mubr.f32.mxu0 0.0
        %334 = vmatmul.mubr.f32.gmra.mrb[0].mxu0 %v263
        %v335 = vpop.f32.mrb[0].mxu0
        %v336 = vadd.f32 0.0, %v335
        %v337 = vpop.f32.mrb[0].mxu0
        %338 = vdwg.mxu0
        %p339 = scmp.ne.s32.totalorder %s30, 0
        // Predicated region
        $region41: #{tpu_custom_call.1} parent=27 // pred_check
          %p340 = pneg %p339
        $region42: #{tpu_custom_call.1} parent=27 // pred_check_branch
          %342 = sbr.rel (%p340) target = $region44
        $region43: #{tpu_custom_call.1} parent=27 // pred_region
          %v343 = vld [vmem:[%s215] sm:$0xff]
          %344 = vadd.xlane.f32.xlu0 %v336
          %v345 = vpop.xlane.xlu0 %344
          %v346 = vadd.f32 %v343, %v345
          %vm347 = vcmask 7168
          %348 = vst.msk [vmem:[%s215] sm:$0xff] %vm347, %v346
          %v349 = vld [vmem:[%s222] sm:$0xff]
          %v350 = vmul.f32 %v336, %v336
          %351 = vadd.xlane.f32.xlu0 %v350
          %v352 = vpop.xlane.xlu0 %351
          %v353 = vadd.f32 %v349, %v352
          %354 = vst.msk [vmem:[%s222] sm:$0xff] %vm347, %v353
        $region44: #{tpu_custom_call.1} parent=27 // pred_fallthru
          _
        // Predicated region
        $region45: #{tpu_custom_call.1} parent=27 // pred_check
          %p355 = pneg %p223
        $region46: #{tpu_custom_call.1} parent=27 // pred_check_branch
          %357 = sbr.rel (%p355) target = $region48
        $region47: #{tpu_custom_call.1} parent=27 // pred_region
          %v358 = vlaneseq
          %v359 = vand.u32 %v358, 127
          %s360 = ssub.s32 16, %s254
          %v361 = vstv %s360
          %vm362 = vcmp.lt.s32.totalorder %v359, %v361
          %v363 = vsel %vm362, %v336, 0.0
          %v364 = vld [vmem:[%s215] sm:$0xff]
          %365 = vadd.xlane.f32.xlu0 %v363
          %v366 = vpop.xlane.xlu0 %365
          %v367 = vadd.f32 %v364, %v366
          %vm368 = vcmask 7168
          %369 = vst.msk [vmem:[%s215] sm:$0xff] %vm368, %v367
          %v370 = vld [vmem:[%s222] sm:$0xff]
          %v371 = vmul.f32 %v363, %v336
          %372 = vadd.xlane.f32.xlu0 %v371
          %v373 = vpop.xlane.xlu0 %372
          %v374 = vadd.f32 %v370, %v373
          %375 = vst.msk [vmem:[%s222] sm:$0xff] %vm368, %v374
        $region48: #{tpu_custom_call.1} parent=27 // pred_fallthru
          _
        %s376 = sand.u32 %s92, 1
        %s377 = scalar_lea.sflag [#allocation5], %s376
        %s378 = sand.u32 %s92, 1
        %s379 = smul.addr %s378, 8
        %s380 = scalar_lea.vmem [#allocation8], %s379
        %s381 = sand.u32 %s118, 1
        %s382 = scalar_lea.sflag [#allocation10], %s381
        %s383 = sand.u32 %s118, 1
        %s384 = smul.addr %s383, 8
        %s385 = scalar_lea.vmem [#allocation9], %s384
        // Predicated region
        $region49: #{tpu_custom_call.1} parent=27 // pred_check
          %p386 = pneg %p102
        $region50: #{tpu_custom_call.1} parent=27 // pred_check_branch
          %388 = sbr.rel (%p386) target = $region52
        $region51: #{tpu_custom_call.1} parent=27 // pred_region
          %s390 = ssub.s32 128, 128
          %391 = vsyncadd %s377, %s390
          %s392 = smul.addr %s29, 128
          %s393 = scalar_lea.hbm %s2, %s392
          %s395 = sshll.u32 %s380, 4
          %s396 = int_to_ptr.vmem [resolvable:$true] %s395
          %398 = dma.vmem_to_hbm [thread:$0]  %s396, 128, %s393, %s377
        $region52: #{tpu_custom_call.1} parent=27 // pred_fallthru
          _
        // Predicated region
        $region53: #{tpu_custom_call.1} parent=27 // pred_check
          %p399 = pneg %p128
        $region54: #{tpu_custom_call.1} parent=27 // pred_check_branch
          %401 = sbr.rel (%p399) target = $region56
        $region55: #{tpu_custom_call.1} parent=27 // pred_region
          %s403 = ssub.s32 128, 128
          %404 = vsyncadd %s382, %s403
          %s405 = smul.addr %s29, 128
          %s406 = scalar_lea.hbm %s3, %s405
          %s408 = sshll.u32 %s385, 4
          %s409 = int_to_ptr.vmem [resolvable:$true] %s408
          %411 = dma.vmem_to_hbm [thread:$0]  %s409, 128, %s406, %s382
        $region56: #{tpu_custom_call.1} parent=27 // pred_fallthru
          _
      $region28: #{tpu_custom_call.1} parent=5 // pred_fallthru
        _
      %p412 = scmp.le.s32.totalorder 2, %s20
      // Predicated region
      $region57: #{tpu_custom_call.1} parent=5 // pred_check
        %p413 = pneg %p412
      $region58: #{tpu_custom_call.1} parent=5 // pred_check_branch
        %415 = sbr.rel (%p413) target = $region60
      $region59: #{tpu_custom_call.1} parent=5 // pred_region
        %s416 = ssub.s32 %s20, 2
        // Predicated region
        $region61: #{tpu_custom_call.1} parent=59 // pred_check
          %p417 = pneg %p108
        $region62: #{tpu_custom_call.1} parent=59 // pred_check_branch
          %419 = sbr.rel (%p417) target = $region64
        $region63: #{tpu_custom_call.1} parent=59 // pred_region
          %s420 = sand.u32 %s93, 1
          %s421 = scalar_lea.sflag [#allocation5], %s420
          %s422 = sand.u32 %s93, 1
          %s423 = smul.addr %s422, 8
          %s424 = scalar_lea.vmem [#allocation8], %s423
          %425 = dma.done %s421, 128
        $region64: #{tpu_custom_call.1} parent=59 // pred_fallthru
          _
        // Predicated region
        $region65: #{tpu_custom_call.1} parent=59 // pred_check
          %p426 = pneg %p134
        $region66: #{tpu_custom_call.1} parent=59 // pred_check_branch
          %428 = sbr.rel (%p426) target = $region68
        $region67: #{tpu_custom_call.1} parent=59 // pred_region
          %s429 = sand.u32 %s119, 1
          %s430 = scalar_lea.sflag [#allocation10], %s429
          %s431 = sand.u32 %s119, 1
          %s432 = smul.addr %s431, 8
          %s433 = scalar_lea.vmem [#allocation9], %s432
          %434 = dma.done %s430, 128
        $region68: #{tpu_custom_call.1} parent=59 // pred_fallthru
          _
      $region60: #{tpu_custom_call.1} parent=5 // pred_fallthru
        _
    $region6: #{tpu_custom_call.1} parent=1 // loop_footer
      %s24 = sadd.s32 1, %s20
    $region7: #{tpu_custom_call.1} parent=1 // loop_footer_branch
      %19 = sbr.rel target = $region3
    $region8: #{tpu_custom_call.1} parent=1 // loop_exit
      _
    %435 = vsyncpa [#allocation4], 1
    %s436 = scalar_lea.sflag [#allocation4], 1
    %437 = vsyncpa %s436, 1
    %438 = vsyncpa [#allocation7], 1
    %439 = vsyncpa [#allocation5], 1
    %s440 = scalar_lea.sflag [#allocation5], 1
    %441 = vsyncpa %s440, 1
    %442 = vsyncpa [#allocation10], 1
    %s443 = scalar_lea.sflag [#allocation10], 1
    %444 = vsyncpa %s443, 1

</llo_original>
